<compile_context>
chip_gen: v6e
topology: v6e:2x2x1
jax: 0.10.0
libtpu: 0.0.40
codegen_flags: <defaults>
</compile_context>

<pallas_src>
import functools

import jax
import jax.numpy as jnp
from jax import lax
from jax.experimental import pallas as pl
from jax.experimental.pallas import tpu as pltpu


LATENT_DIM = 32
HIDDEN_DIM = 128
IN_DIM = LATENT_DIM + HIDDEN_DIM   # 160
H1 = 256
H2 = 128
OUT_DIM = 1


def _mlp_kernel(x_ref, w1_ref, b1_ref, w2_ref, b2_ref, w3_ref, b3_ref, o_ref):
    """3-layer MLP + sigmoid for one tile of rows, entirely in VMEM.

    o_ref is a lane-dense (1, tile_m) row: element j is the probability for
    row j of this tile.
    """
    x = x_ref[...]                                                     # (TM, 160)

    # Layers 1 & 2 on the MXU with f32 accumulation.
    h1 = jnp.dot(x, w1_ref[...], preferred_element_type=jnp.float32)  # (TM, 256)
    h1 = jnp.maximum(h1 + b1_ref[...], 0.0)                           # f32 ReLU
    h2 = jnp.dot(h1.astype(w2_ref.dtype), w2_ref[...],
                 preferred_element_type=jnp.float32)                   # (TM, 128)
    h2 = jnp.maximum(h2 + b2_ref[...], 0.0)                           # f32 ReLU

    # Layer 3 (out_features == 1): contract h2 against the (1, H2) weight row
    # so the result comes out lane-dense as (1, TM) -- no width-1 column and
    # no masked partial stores.
    w3_row = w3_ref[...].astype(jnp.float32)                          # (1, 128)
    logits = lax.dot_general(
        w3_row, h2, (((1,), (1,)), ((), ())),
        preferred_element_type=jnp.float32) + b3_ref[...]              # (1, TM)

    o_ref[...] = jax.nn.sigmoid(logits).astype(o_ref.dtype)           # (1, TM)


def _round_up(v, m):
    return ((v + m - 1) // m) * m


def _choose_tile_m(M, tile_m_max, min_steps=2):
    """Row-tile size.

    Returns either the full M (small problems: full-extent blocks are always
    legal) or a multiple of 16 (legal sublane granularity for f32 and bf16),
    capped at tile_m_max, and small enough that the grid has at least
    `min_steps` steps so v7x's two TensorCores both get work.
    """
    tile_m_max = max(16, _round_up(tile_m_max, 16))
    if M <= min(tile_m_max, 16 * min_steps):
        return M
    return min(tile_m_max, _round_up(pl.cdiv(M, min_steps), 16))


@functools.partial(jax.jit, static_argnames=("tile_m",))
def continue_predictor_forward(x, params, tile_m=1024):
    """x: (B, S, IN_DIM) -> (B, S, 1) continuation probability."""
    w1, b1, w2, b2, w3t, b3 = params
    B, S, F = x.shape
    assert F == IN_DIM

    M = B * S
    x2d = x.reshape(M, F)

    tile_eff = _choose_tile_m(M, tile_m)
    grid_m = pl.cdiv(M, tile_eff)          # no padding copy of x2d in HBM

    out3 = pl.pallas_call(
        _mlp_kernel,
        # Lane-dense output slab: one (1, tile_eff) row per grid step.
        out_shape=jax.ShapeDtypeStruct((grid_m, 1, tile_eff), x.dtype),
        grid_spec=pltpu.PrefetchScalarGridSpec(
            num_scalar_prefetch=0,
            grid=(grid_m,),
            in_specs=[
                # activations: streamed over row tiles
                pl.BlockSpec((tile_eff, F), lambda i: (i, 0)),
                # weights / biases: constant index_map -> resident, DMA'd once
                pl.BlockSpec((F, H1), lambda i: (0, 0)),
                pl.BlockSpec((1, H1), lambda i: (0, 0)),
                pl.BlockSpec((H1, H2), lambda i: (0, 0)),
                pl.BlockSpec((1, H2), lambda i: (0, 0)),
                pl.BlockSpec((1, H2), lambda i: (0, 0)),     # w3 stored as row
                pl.BlockSpec((1, OUT_DIM), lambda i: (0, 0)),
            ],
            # Leading (grid) dim squeezed: kernel sees a (1, tile_eff) ref.
            out_specs=pl.BlockSpec((None, 1, tile_eff), lambda i: (i, 0, 0)),
        ),
        compiler_params=pltpu.CompilerParams(
            dimension_semantics=("parallel",),
        ),
    )(x2d, w1, b1, w2, b2, w3t, b3)

    # Flatten the (grid_m, 1, tile_eff) slab back to rows, drop the garbage
    # rows from the partial last tile, restore (B, S, 1).
    return out3.reshape(grid_m * tile_eff)[:M].reshape(B, S, OUT_DIM)


def init_params(key, dtype=jnp.float32):
    """Parameter init mimicking nn.Linear default (uniform).

    w1/w2 are stored (in, out); the last layer is stored as a (1, H2) row
    (same as PyTorch's (out, in) layout) so the kernel can produce a
    lane-dense output. Biases stay f32.
    """
    keys = jax.random.split(key, 6)

    def linear(kw, kb, fan_in, fan_out, transpose_w=False):
        bound = 1.0 / jnp.sqrt(fan_in)
        w_shape = (fan_out, fan_in) if transpose_w else (fan_in, fan_out)
        w = jax.random.uniform(kw, w_shape, jnp.float32, -bound, bound)
        b = jax.random.uniform(kb, (1, fan_out), jnp.float32, -bound, bound)
        return w.astype(dtype), b

    w1, b1 = linear(keys[0], keys[1], IN_DIM, H1)
    w2, b2 = linear(keys[2], keys[3], H1, H2)
    w3t, b3 = linear(keys[4], keys[5], H2, OUT_DIM, transpose_w=True)
    return (w1, b1, w2, b2, w3t, b3)


def _reference_forward(x, params):
    """Pure-JAX reference for correctness check (f32 math)."""
    w1, b1, w2, b2, w3t, b3 = params
    x = x.astype(jnp.float32)
    h1 = jnp.maximum(x @ w1.astype(jnp.float32) + b1[0], 0.0)
    h2 = jnp.maximum(h1 @ w2.astype(jnp.float32) + b2[0], 0.0)
    return jax.nn.sigmoid(h2 @ w3t.astype(jnp.float32).T + b3[0])


if __name__ == "__main__":
    key = jax.random.PRNGKey(0)
    k_x, k_p, k_x2 = jax.random.split(key, 3)

    # --- f32 path, small shape ------------------------------------------
    batch, seq = 2, 8
    x = jax.random.normal(k_x, (batch, seq, IN_DIM), jnp.float32)
    params = init_params(k_p)

    out = jax.block_until_ready(continue_predictor_forward(x, params))
    assert out.shape == (batch, seq, 1), out.shape
    ref = _reference_forward(x, params)
    assert jnp.allclose(out, ref, atol=1e-5, rtol=1e-5), (
        float(jnp.max(jnp.abs(out - ref))))
    assert bool(jnp.all((out >= 0.0) & (out <= 1.0)))

    # --- f32 path, non-divisible M (exercises cdiv grid + partial tile) --
    x2 = jax.random.normal(k_x2, (3, 23, IN_DIM), jnp.float32)   # M = 69
    out2 = jax.block_until_ready(continue_predictor_forward(x2, params))
    ref2 = _reference_forward(x2, params)
    assert out2.shape == (3, 23, 1), out2.shape
    assert jnp.allclose(out2, ref2, atol=1e-5, rtol=1e-5), (
        float(jnp.max(jnp.abs(out2 - ref2))))

    # --- bf16 streaming path (cast at the producer) ----------------------
    w1, b1, w2, b2, w3t, b3 = params
    params_bf16 = (w1.astype(jnp.bfloat16), b1, w2.astype(jnp.bfloat16), b2,
                   w3t.astype(jnp.bfloat16), b3)
    x_bf16 = x.astype(jnp.bfloat16)
    out_bf16 = jax.block_until_ready(
        continue_predictor_forward(x_bf16, params_bf16))
    assert out_bf16.shape == (batch, seq, 1), out_bf16.shape
    assert jnp.allclose(out_bf16.astype(jnp.float32), ref,
                        atol=2e-2, rtol=2e-2), (
        float(jnp.max(jnp.abs(out_bf16.astype(jnp.float32) - ref))))

    print("KERNEL_OK")
</pallas_src>

<mosaic_0001>
module attributes {stable_mosaic.version = 11 : i64} {
  func.func @_mlp_kernel(%arg0: i32, %arg1: memref<16x160xf32, #tpu.memory_space<vmem>>, %arg2: memref<160x256xf32, #tpu.memory_space<vmem>>, %arg3: memref<1x256xf32, #tpu.memory_space<vmem>>, %arg4: memref<256x128xf32, #tpu.memory_space<vmem>>, %arg5: memref<1x128xf32, #tpu.memory_space<vmem>>, %arg6: memref<1x128xf32, #tpu.memory_space<vmem>>, %arg7: memref<1x1xf32, #tpu.memory_space<vmem>>, %arg8: memref<1x1x16xf32, #tpu.memory_space<vmem>>) attributes {dimension_semantics = [#tpu.dimension_semantics<parallel>], iteration_bounds = array<i64: 1>, scalar_prefetch = 0 : i64, scratch_operands = 0 : i64, tpu.core_type = #tpu.core_type<tc>, window_params = [{transform_indices = @transform_0, window_bounds = array<i64: 16, 160>}, {pipeline_mode = #tpu.pipeline_mode<synchronous>, transform_indices = @transform_1, window_bounds = array<i64: 160, 256>}, {pipeline_mode = #tpu.pipeline_mode<synchronous>, transform_indices = @transform_2, window_bounds = array<i64: 1, 256>}, {pipeline_mode = #tpu.pipeline_mode<synchronous>, transform_indices = @transform_3, window_bounds = array<i64: 256, 128>}, {pipeline_mode = #tpu.pipeline_mode<synchronous>, transform_indices = @transform_4, window_bounds = array<i64: 1, 128>}, {pipeline_mode = #tpu.pipeline_mode<synchronous>, transform_indices = @transform_5, window_bounds = array<i64: 1, 128>}, {pipeline_mode = #tpu.pipeline_mode<synchronous>, transform_indices = @transform_6, window_bounds = array<i64: 1, 1>}, {transform_indices = @transform_7, window_bounds = array<i64: 1, 1, 16>}]} {
    %c0 = arith.constant 0 : index
    %c0_0 = arith.constant 0 : index
    %0 = vector.load %arg1[%c0, %c0_0] : memref<16x160xf32, #tpu.memory_space<vmem>>, vector<16x160xf32>
    %c0_1 = arith.constant 0 : index
    %c0_2 = arith.constant 0 : index
    %1 = vector.load %arg2[%c0_1, %c0_2] : memref<160x256xf32, #tpu.memory_space<vmem>>, vector<160x256xf32>
    %cst = arith.constant dense<0.000000e+00> : vector<16x256xf32>
    %2 = tpu.matmul %0, %1, %cst {dimension_numbers = #tpu.dot_dimension_numbers<[1], [0], [0], [1], [0, 0, 1, 1], [], []>} : vector<16x160xf32>, vector<160x256xf32>, vector<16x256xf32> -> vector<16x256xf32>
    %c0_3 = arith.constant 0 : index
    %c0_4 = arith.constant 0 : index
    %3 = vector.load %arg3[%c0_3, %c0_4] : memref<1x256xf32, #tpu.memory_space<vmem>>, vector<1x256xf32>
    %4 = vector.broadcast %3 : vector<1x256xf32> to vector<16x256xf32>
    %5 = arith.addf %2, %4 : vector<16x256xf32>
    %cst_5 = arith.constant 0.000000e+00 : f32
    %6 = vector.broadcast %cst_5 : f32 to vector<16x256xf32>
    %7 = arith.maximumf %5, %6 : vector<16x256xf32>
    %c0_6 = arith.constant 0 : index
    %c0_7 = arith.constant 0 : index
    %8 = vector.load %arg4[%c0_6, %c0_7] : memref<256x128xf32, #tpu.memory_space<vmem>>, vector<256x128xf32>
    %cst_8 = arith.constant dense<0.000000e+00> : vector<16x128xf32>
    %9 = tpu.matmul %7, %8, %cst_8 {dimension_numbers = #tpu.dot_dimension_numbers<[1], [0], [0], [1], [0, 0, 1, 1], [], []>} : vector<16x256xf32>, vector<256x128xf32>, vector<16x128xf32> -> vector<16x128xf32>
    %c0_9 = arith.constant 0 : index
    %c0_10 = arith.constant 0 : index
    %10 = vector.load %arg5[%c0_9, %c0_10] : memref<1x128xf32, #tpu.memory_space<vmem>>, vector<1x128xf32>
    %11 = vector.broadcast %10 : vector<1x128xf32> to vector<16x128xf32>
    %12 = arith.addf %9, %11 : vector<16x128xf32>
    %cst_11 = arith.constant 0.000000e+00 : f32
    %13 = vector.broadcast %cst_11 : f32 to vector<16x128xf32>
    %14 = arith.maximumf %12, %13 : vector<16x128xf32>
    %c0_12 = arith.constant 0 : index
    %c0_13 = arith.constant 0 : index
    %15 = vector.load %arg6[%c0_12, %c0_13] : memref<1x128xf32, #tpu.memory_space<vmem>>, vector<1x128xf32>
    %cst_14 = arith.constant dense<0.000000e+00> : vector<1x16xf32>
    %16 = tpu.matmul %15, %14, %cst_14 {dimension_numbers = #tpu.dot_dimension_numbers<[1], [1], [0], [0], [0, 0, 1, 0], [], []>} : vector<1x128xf32>, vector<16x128xf32>, vector<1x16xf32> -> vector<1x16xf32>
    %c0_15 = arith.constant 0 : index
    %c0_16 = arith.constant 0 : index
    %17 = vector.load %arg7[%c0_15, %c0_16] : memref<1x1xf32, #tpu.memory_space<vmem>>, vector<1x1xf32>
    %18 = vector.broadcast %17 : vector<1x1xf32> to vector<1x16xf32>
    %19 = arith.addf %16, %18 : vector<1x16xf32>
    %20 = arith.negf %19 : vector<1x16xf32>
    %21 = math.exp %20 : vector<1x16xf32>
    %cst_17 = arith.constant 1.000000e+00 : f32
    %22 = vector.broadcast %cst_17 : f32 to vector<1x16xf32>
    %23 = arith.addf %22, %21 : vector<1x16xf32>
    %24 = arith.divf %22, %23 : vector<1x16xf32>
    %c0_18 = arith.constant 0 : index
    %c0_19 = arith.constant 0 : index
    %c0_20 = arith.constant 0 : index
    %25 = vector.load %arg8[%c0_18, %c0_19, %c0_20] : memref<1x1x16xf32, #tpu.memory_space<vmem>>, vector<1x1x16xf32>
    %26 = vector.shape_cast %25 : vector<1x1x16xf32> to vector<1x16xf32>
    %27 = vector.shape_cast %24 : vector<1x16xf32> to vector<1x1x16xf32>
    tpu.vector_store %arg8[%c0_18, %c0_19, %c0_20], %27 {strides = array<i32>} : memref<1x1x16xf32, #tpu.memory_space<vmem>>, vector<1x1x16xf32>,
    return
  }
  func.func @transform_0(%arg0: i32) -> (i32, i32) {
    %c0_i32 = arith.constant 0 : i32
    %c0_i32_0 = arith.constant 0 : i32
    return %arg0, %c0_i32 : i32, i32
  }
  func.func @transform_1(%arg0: i32) -> (i32, i32) {
    %c0_i32 = arith.constant 0 : i32
    %c0_i32_0 = arith.constant 0 : i32
    %c0_i32_1 = arith.constant 0 : i32
    return %c0_i32, %c0_i32_0 : i32, i32
  }
  func.func @transform_2(%arg0: i32) -> (i32, i32) {
    %c0_i32 = arith.constant 0 : i32
    %c0_i32_0 = arith.constant 0 : i32
    %c0_i32_1 = arith.constant 0 : i32
    return %c0_i32, %c0_i32_0 : i32, i32
  }
  func.func @transform_3(%arg0: i32) -> (i32, i32) {
    %c0_i32 = arith.constant 0 : i32
    %c0_i32_0 = arith.constant 0 : i32
    %c0_i32_1 = arith.constant 0 : i32
    return %c0_i32, %c0_i32_0 : i32, i32
  }
  func.func @transform_4(%arg0: i32) -> (i32, i32) {
    %c0_i32 = arith.constant 0 : i32
    %c0_i32_0 = arith.constant 0 : i32
    %c0_i32_1 = arith.constant 0 : i32
    return %c0_i32, %c0_i32_0 : i32, i32
  }
  func.func @transform_5(%arg0: i32) -> (i32, i32) {
    %c0_i32 = arith.constant 0 : i32
    %c0_i32_0 = arith.constant 0 : i32
    %c0_i32_1 = arith.constant 0 : i32
    return %c0_i32, %c0_i32_0 : i32, i32
  }
  func.func @transform_6(%arg0: i32) -> (i32, i32) {
    %c0_i32 = arith.constant 0 : i32
    %c0_i32_0 = arith.constant 0 : i32
    %c0_i32_1 = arith.constant 0 : i32
    return %c0_i32, %c0_i32_0 : i32, i32
  }
  func.func @transform_7(%arg0: i32) -> (i32, i32, i32) {
    %c0_i32 = arith.constant 0 : i32
    %c0_i32_0 = arith.constant 0 : i32
    %c0_i32_1 = arith.constant 0 : i32
    return %arg0, %c0_i32, %c0_i32_0 : i32, i32, i32
  }
}

</mosaic_0001>

<llo_original>
// kernel: continue_predictor_forward.1
$region0: #{continue_predictor_forward.1}
  #allocation0 [shape = 'u32[]', space=smem, size = 0x4, offset = 0x4, fixed_abs, tag = 'smem constant byte address 0x4 - core index']
  #allocation1 [shape = 'u32[144,128]{1,0:T(1,128)}', space=vmem, size = 0x12000, scoped, tag = 'internal scratch']
  #allocation2 [shape = 'f32[1,1]{1,0:T(1,128)S(1)}', space=vmem, size = 0x200, scoped, tag = 'scoped memory for continue_predictor_forward.1']
  %s0 = inlined_call_operand.hbm [shape: f32[16,160], index: 0, kind: input, shape index: {}]
  %s1 = inlined_call_operand.hbm [shape: f32[160,256], index: 1, kind: input, shape index: {}]
  %s2 = inlined_call_operand.vmem [shape: f32[1,256], index: 2, kind: input, shape index: {}]
  %s3 = inlined_call_operand.hbm [shape: f32[256,128], index: 3, kind: input, shape index: {}]
  %s4 = inlined_call_operand.vmem [shape: f32[1,128], index: 4, kind: input, shape index: {}]
  %s5 = inlined_call_operand.vmem [shape: f32[1,128], index: 5, kind: input, shape index: {}]
  %s6 = inlined_call_operand.<no memory space> [shape: f32[1,1], index: 6, kind: input, shape index: {}]
  %s7 = inlined_call_operand.vmem [shape: f32[1,1,16], index: 7, kind: output, shape index: {}]
  %s8 = sld [smem:[#allocation0]]
  $region50: #{continue_predictor_forward.1} parent=0
    _
  %s10 = ssub.s32 1, %s8
  %s11 = scalar_select 0, %s10, %s8
  %v12 = vstv %s6
  %13 = vst [vmem:[#allocation2] sm:$0x1] %v12
  $region1: #{continue_predictor_forward.1} parent=0
    #allocation3 [shape = 'u8[16384]{0}', space=vmem, size = 0x4000, scoped, tag = 'input window, operand 0, single buffered']
    #allocation4 [shape = 's32[1]{0}', space=sflag, size = 0x4, scoped, tag = 'scoped memory for continue_predictor_forward.1']
    #allocation5 [shape = 'u8[163840]{0}', space=vmem, size = 0x28000, scoped, tag = 'input window, operand 1, single buffered']
    #allocation6 [shape = 's32[1]{0}', space=sflag, size = 0x4, scoped, tag = 'scoped memory for continue_predictor_forward.1']
    #allocation7 [shape = 'u8[131072]{0}', space=vmem, size = 0x20000, scoped, tag = 'input window, operand 3, single buffered']
    %14 = vsyncpa [#allocation4], 0
    %15 = vsyncpa [#allocation6], 0
    // Predicated region
    $region2: #{continue_predictor_forward.1} parent=1 // pred_check
      _
    $region3: #{continue_predictor_forward.1} parent=1 // pred_check_branch
      %17 = sbr.rel (0) target = $region5
    $region4: #{continue_predictor_forward.1} parent=1 // pred_region
      %s19 = ssub.s32 512, 512
      %20 = vsyncadd [#allocation4], %s19
      %s21 = sshll.u32 [#allocation3], 4
      %s22 = int_to_ptr.vmem [resolvable:$true] %s21
      %27 = dma.hbm_to_vmem [thread:$0]  %s0, 512, %s22, [#allocation4], 256, 256, 16
    $region5: #{continue_predictor_forward.1} parent=1 // pred_fallthru
      _
    // Predicated region
    $region6: #{continue_predictor_forward.1} parent=1 // pred_check
      _
    $region7: #{continue_predictor_forward.1} parent=1 // pred_check_branch
      %29 = sbr.rel (0) target = $region9
    $region8: #{continue_predictor_forward.1} parent=1 // pred_region
      %s31 = ssub.s32 5120, 5120
      %32 = vsyncadd [#allocation6], %s31
      %s33 = sshll.u32 [#allocation5], 4
      %s34 = int_to_ptr.vmem [resolvable:$true] %s33
      %39 = dma.hbm_to_vmem [thread:$0]  %s1, 5120, %s34, [#allocation6], 256, 256, 16
    $region9: #{continue_predictor_forward.1} parent=1 // pred_fallthru
      _
    // Predicated region
    $region10: #{continue_predictor_forward.1} parent=1 // pred_check
      _
    $region11: #{continue_predictor_forward.1} parent=1 // pred_check_branch
      %41 = sbr.rel (0) target = $region13
    $region12: #{continue_predictor_forward.1} parent=1 // pred_region
      _
    $region13: #{continue_predictor_forward.1} parent=1 // pred_fallthru
      _
    // Predicated region
    $region14: #{continue_predictor_forward.1} parent=1 // pred_check
      _
    $region15: #{continue_predictor_forward.1} parent=1 // pred_check_branch
      %43 = sbr.rel (0) target = $region17
    $region16: #{continue_predictor_forward.1} parent=1 // pred_region
      %s45 = ssub.s32 4096, 4096
      %46 = vsyncadd [#allocation6], %s45
      %s47 = sshll.u32 [#allocation7], 4
      %s48 = int_to_ptr.vmem [resolvable:$true] %s47
      %53 = dma.hbm_to_vmem [thread:$0]  %s3, 4096, %s48, [#allocation6], 128, 128, 8
    $region17: #{continue_predictor_forward.1} parent=1 // pred_fallthru
      _
    // Predicated region
    $region18: #{continue_predictor_forward.1} parent=1 // pred_check
      _
    $region19: #{continue_predictor_forward.1} parent=1 // pred_check_branch
      %55 = sbr.rel (0) target = $region21
    $region20: #{continue_predictor_forward.1} parent=1 // pred_region
      _
    $region21: #{continue_predictor_forward.1} parent=1 // pred_fallthru
      _
    // Predicated region
    $region22: #{continue_predictor_forward.1} parent=1 // pred_check
      _
    $region23: #{continue_predictor_forward.1} parent=1 // pred_check_branch
      %57 = sbr.rel (0) target = $region25
    $region24: #{continue_predictor_forward.1} parent=1 // pred_region
      _
    $region25: #{continue_predictor_forward.1} parent=1 // pred_fallthru
      _
    // Predicated region
    $region26: #{continue_predictor_forward.1} parent=1 // pred_check
      _
    $region27: #{continue_predictor_forward.1} parent=1 // pred_check_branch
      %59 = sbr.rel (0) target = $region29
    $region28: #{continue_predictor_forward.1} parent=1 // pred_region
      _
    $region29: #{continue_predictor_forward.1} parent=1 // pred_fallthru
      _
    // Predicated region
    $region30: #{continue_predictor_forward.1} parent=1 // pred_check
      _
    $region31: #{continue_predictor_forward.1} parent=1 // pred_check_branch
      %61 = sbr.rel (0) target = $region33
    $region32: #{continue_predictor_forward.1} parent=1 // pred_region
      %62 = dma.done [#allocation4], 512
    $region33: #{continue_predictor_forward.1} parent=1 // pred_fallthru
      _
    // Predicated region
    $region34: #{continue_predictor_forward.1} parent=1 // pred_check
      _
    $region35: #{continue_predictor_forward.1} parent=1 // pred_check_branch
      %64 = sbr.rel (0) target = $region37
    $region36: #{continue_predictor_forward.1} parent=1 // pred_region
      %65 = dma.done [#allocation6], 5120
    $region37: #{continue_predictor_forward.1} parent=1 // pred_fallthru
      _
    // Predicated region
    $region38: #{continue_predictor_forward.1} parent=1 // pred_check
      _
    $region39: #{continue_predictor_forward.1} parent=1 // pred_check_branch
      %67 = sbr.rel (0) target = $region41
    $region40: #{continue_predictor_forward.1} parent=1 // pred_region
      %68 = dma.done [#allocation6], 4096
    $region41: #{continue_predictor_forward.1} parent=1 // pred_fallthru
      _
    %v69 = vld [vmem:[#allocation3] sm:$0xff]
    %v70 = vld [vmem:[#allocation3 + $0x8] sm:$0xff]
    %v71 = vld [vmem:[#allocation3 + $0x10] sm:$0xff]
    %v72 = vld [vmem:[#allocation3 + $0x18] sm:$0xff]
    %v73 = vld [vmem:[#allocation5] sm:$0xff]
    %v74 = vld [vmem:[#allocation5 + $0x8] sm:$0xff]
    %v75 = vld [vmem:[#allocation5 + $0x10] sm:$0xff]
    %v76 = vld [vmem:[#allocation5 + $0x18] sm:$0xff]
    %v77 = vld [vmem:[#allocation5 + $0x20] sm:$0xff]
    %v78 = vld [vmem:[#allocation5 + $0x28] sm:$0xff]
    %v79 = vld [vmem:[#allocation5 + $0x30] sm:$0xff]
    %v80 = vld [vmem:[#allocation5 + $0x38] sm:$0xff]
    %v81 = vld [vmem:[#allocation5 + $0x40] sm:$0xff]
    %v82 = vld [vmem:[#allocation5 + $0x48] sm:$0xff]
    %v83 = vld [vmem:[#allocation5 + $0x50] sm:$0xff]
    %v84 = vld [vmem:[#allocation5 + $0x58] sm:$0xff]
    %v85 = vld [vmem:[#allocation5 + $0x60] sm:$0xff]
    %v86 = vld [vmem:[#allocation5 + $0x68] sm:$0xff]
    %v87 = vld [vmem:[#allocation5 + $0x70] sm:$0xff]
    %v88 = vld [vmem:[#allocation5 + $0x78] sm:$0xff]
    %v89 = vld [vmem:[#allocation5 + $0x80] sm:$0xff]
    %v90 = vld [vmem:[#allocation5 + $0x88] sm:$0xff]
    %v91 = vld [vmem:[#allocation5 + $0x90] sm:$0xff]
    %v92 = vld [vmem:[#allocation5 + $0x98] sm:$0xff]
    %v93 = vld [vmem:[#allocation5 + $0xa0] sm:$0xff]
    %v94 = vld [vmem:[#allocation5 + $0xa8] sm:$0xff]
    %v95 = vld [vmem:[#allocation5 + $0xb0] sm:$0xff]
    %v96 = vld [vmem:[#allocation5 + $0xb8] sm:$0xff]
    %v97 = vld [vmem:[#allocation5 + $0xc0] sm:$0xff]
    %v98 = vld [vmem:[#allocation5 + $0xc8] sm:$0xff]
    %v99 = vld [vmem:[#allocation5 + $0xd0] sm:$0xff]
    %v100 = vld [vmem:[#allocation5 + $0xd8] sm:$0xff]
    %v101 = vld [vmem:[#allocation5 + $0xe0] sm:$0xff]
    %v102 = vld [vmem:[#allocation5 + $0xe8] sm:$0xff]
    %v103 = vld [vmem:[#allocation5 + $0xf0] sm:$0xff]
    %v104 = vld [vmem:[#allocation5 + $0xf8] sm:$0xff]
    %v105 = vld [vmem:[#allocation5 + $0x100] sm:$0xff]
    %v106 = vld [vmem:[#allocation5 + $0x108] sm:$0xff]
    %v107 = vld [vmem:[#allocation5 + $0x110] sm:$0xff]
    %v108 = vld [vmem:[#allocation5 + $0x118] sm:$0xff]
    %v109 = vld [vmem:[#allocation5 + $0x120] sm:$0xff]
    %v110 = vld [vmem:[#allocation5 + $0x128] sm:$0xff]
    %v111 = vld [vmem:[#allocation5 + $0x130] sm:$0xff]
    %v112 = vld [vmem:[#allocation5 + $0x138] sm:$0xff]
    %v113 = vld [vmem:[%s2] sm:$0x3]
    %v115 = vlaneseq
    %v116 = vshrl.u32 %v115, 7
    %v117 = vsub.s32 0, %v116
    %v118 = vrot.slane %v113, %v117
    %v119 = vlaneseq
    %v120 = vshrl.u32 %v119, 7
    %v121 = vsub.s32 1, %v120
    %v122 = vrot.slane %v113, %v121
    %vm125 = vcmask 261120
    %v127 = vsel %vm125, %v70, 0
    %v130 = vsel %vm125, %v72, 0
    %132 = vmatprep.subr.mxu0 %v104
    %133 = vmatpush1.msra.mxu0 %v103
    %134 = vmatprep.subr.mxu0 %v102
    %135 = vmatpush1.msra.mxu0 %v101
    %136 = vmatprep.subr.mxu0 %v100
    %137 = vmatpush1.msra.mxu0 %v99
    %138 = vmatprep.subr.mxu0 %v98
    %139 = vmatpush1.msra.mxu0 %v97
    %140 = vmatprep.subr.mxu0 %v96
    %141 = vmatpush1.msra.mxu0 %v95
    %142 = vmatprep.subr.mxu0 %v94
    %143 = vmatpush1.msra.mxu0 %v93
    %144 = vmatprep.subr.mxu0 %v92
    %145 = vmatpush1.msra.mxu0 %v91
    %146 = vmatprep.subr.mxu0 %v90
    %147 = vmatpush1.msra.mxu0 %v89
    %148 = vmatprep.subr.mxu0 %v88
    %149 = vmatpush1.msra.mxu0 %v87
    %150 = vmatprep.subr.mxu0 %v86
    %151 = vmatpush1.msra.mxu0 %v85
    %152 = vmatprep.subr.mxu0 %v84
    %153 = vmatpush1.msra.mxu0 %v83
    %154 = vmatprep.subr.mxu0 %v82
    %155 = vmatpush1.msra.mxu0 %v81
    %156 = vmatprep.subr.mxu0 %v80
    %157 = vmatpush1.msra.mxu0 %v79
    %158 = vmatprep.subr.mxu0 %v78
    %159 = vmatpush1.msra.mxu0 %v77
    %160 = vmatprep.subr.mxu0 %v76
    %161 = vmatpush1.msra.mxu0 %v75
    %162 = vmatprep.subr.mxu0 %v74
    %163 = vmatpush1.msra.mxu0 %v73
    %164 = vmatprep.subr.mxu0 0.0
    %165 = vmatpush2.msra.mxu0 0.0
    %166 = vmatprep.subr.mxu0 0.0
    %167 = vmatpush2.msra.mxu0 0.0
    %168 = vmatprep.subr.mxu0 0.0
    %169 = vmatpush2.msra.mxu0 0.0
    %170 = vmatprep.subr.mxu0 0.0
    %171 = vmatpush2.msra.mxu0 0.0
    %172 = vmatprep.subr.mxu0 0.0
    %173 = vmatpush2.msra.mxu0 0.0
    %174 = vmatprep.subr.mxu0 0.0
    %175 = vmatpush2.msra.mxu0 0.0
    %176 = vmatprep.subr.mxu0 0.0
    %177 = vmatpush2.msra.mxu0 0.0
    %178 = vmatprep.subr.mxu0 0.0
    %179 = vmatpush2.msra.mxu0 0.0
    %180 = vmatprep.subr.mxu0 0.0
    %181 = vmatpush2.msra.mxu0 0.0
    %182 = vmatprep.subr.mxu0 0.0
    %183 = vmatpush2.msra.mxu0 0.0
    %184 = vmatprep.subr.mxu0 0.0
    %185 = vmatpush2.msra.mxu0 0.0
    %186 = vmatprep.subr.mxu0 0.0
    %187 = vmatpush2.msra.mxu0 0.0
    %188 = vmatprep.subr.mxu0 %v112
    %189 = vmatpush2.msra.mxu0 %v111
    %190 = vmatprep.subr.mxu0 %v110
    %191 = vmatpush2.msra.mxu0 %v109
    %192 = vmatprep.subr.mxu0 %v108
    %193 = vmatpush2.msra.mxu0 %v107
    %194 = vmatprep.subr.mxu0 %v106
    %195 = vmatpush2.msra.mxu0 %v105
    %196 = vmatprep.mubr.f32.mxu0 %v127
    %197 = vmatmul.mubr.f32.gmra.mxu0 %v69
    %v198 = vpop.f32.mrf.mxu0
    %v199 = vadd.f32 %v118, %v198
    %v200 = vpop.f32.mrf.mxu0
    %v201 = vadd.f32 %v122, %v200
    %202 = vmatprep.mubr.f32.mxu0 %v130
    %203 = vmatmul.mubr.f32.gmra.mxu0 %v71
    %v204 = vpop.f32.mrf.mxu0
    %v205 = vadd.f32 %v118, %v204
    %v206 = vpop.f32.mrf.mxu0
    %v207 = vadd.f32 %v122, %v206
    %208 = vdwg.mxu0
    %v209 = vmax.f32 %v199, 0.0
    %v210 = vmax.f32 %v201, 0.0
    %v211 = vmax.f32 %v205, 0.0
    %v212 = vmax.f32 %v207, 0.0
    %v213 = vld [vmem:[#allocation7] sm:$0xff]
    %v214 = vld [vmem:[#allocation7 + $0x8] sm:$0xff]
    %v215 = vld [vmem:[#allocation7 + $0x10] sm:$0xff]
    %v216 = vld [vmem:[#allocation7 + $0x18] sm:$0xff]
    %v217 = vld [vmem:[#allocation7 + $0x20] sm:$0xff]
    %v218 = vld [vmem:[#allocation7 + $0x28] sm:$0xff]
    %v219 = vld [vmem:[#allocation7 + $0x30] sm:$0xff]
    %v220 = vld [vmem:[#allocation7 + $0x38] sm:$0xff]
    %v221 = vld [vmem:[#allocation7 + $0x40] sm:$0xff]
    %v222 = vld [vmem:[#allocation7 + $0x48] sm:$0xff]
    %v223 = vld [vmem:[#allocation7 + $0x50] sm:$0xff]
    %v224 = vld [vmem:[#allocation7 + $0x58] sm:$0xff]
    %v225 = vld [vmem:[#allocation7 + $0x60] sm:$0xff]
    %v226 = vld [vmem:[#allocation7 + $0x68] sm:$0xff]
    %v227 = vld [vmem:[#allocation7 + $0x70] sm:$0xff]
    %v228 = vld [vmem:[#allocation7 + $0x78] sm:$0xff]
    %v229 = vld [vmem:[#allocation7 + $0x80] sm:$0xff]
    %v230 = vld [vmem:[#allocation7 + $0x88] sm:$0xff]
    %v231 = vld [vmem:[#allocation7 + $0x90] sm:$0xff]
    %v232 = vld [vmem:[#allocation7 + $0x98] sm:$0xff]
    %v233 = vld [vmem:[#allocation7 + $0xa0] sm:$0xff]
    %v234 = vld [vmem:[#allocation7 + $0xa8] sm:$0xff]
    %v235 = vld [vmem:[#allocation7 + $0xb0] sm:$0xff]
    %v236 = vld [vmem:[#allocation7 + $0xb8] sm:$0xff]
    %v237 = vld [vmem:[#allocation7 + $0xc0] sm:$0xff]
    %v238 = vld [vmem:[#allocation7 + $0xc8] sm:$0xff]
    %v239 = vld [vmem:[#allocation7 + $0xd0] sm:$0xff]
    %v240 = vld [vmem:[#allocation7 + $0xd8] sm:$0xff]
    %v241 = vld [vmem:[#allocation7 + $0xe0] sm:$0xff]
    %v242 = vld [vmem:[#allocation7 + $0xe8] sm:$0xff]
    %v243 = vld [vmem:[#allocation7 + $0xf0] sm:$0xff]
    %v244 = vld [vmem:[#allocation7 + $0xf8] sm:$0xff]
    %v245 = vld [vmem:[%s4] sm:$0x1]
    %v247 = vlaneseq
    %v248 = vshrl.u32 %v247, 7
    %v249 = vsub.s32 0, %v248
    %v250 = vrot.slane %v245, %v249
    %252 = vmatprep.subr.mxu0 0.0
    %253 = vmatpush1.msra.mxu0 %v228
    %254 = vmatprep.subr.mxu0 0.0
    %255 = vmatpush1.msra.mxu0 %v227
    %256 = vmatprep.subr.mxu0 0.0
    %257 = vmatpush1.msra.mxu0 %v226
    %258 = vmatprep.subr.mxu0 0.0
    %259 = vmatpush1.msra.mxu0 %v225
    %260 = vmatprep.subr.mxu0 0.0
    %261 = vmatpush1.msra.mxu0 %v224
    %262 = vmatprep.subr.mxu0 0.0
    %263 = vmatpush1.msra.mxu0 %v223
    %264 = vmatprep.subr.mxu0 0.0
    %265 = vmatpush1.msra.mxu0 %v222
    %266 = vmatprep.subr.mxu0 0.0
    %267 = vmatpush1.msra.mxu0 %v221
    %268 = vmatprep.subr.mxu0 0.0
    %269 = vmatpush1.msra.mxu0 %v220
    %270 = vmatprep.subr.mxu0 0.0
    %271 = vmatpush1.msra.mxu0 %v219
    %272 = vmatprep.subr.mxu0 0.0
    %273 = vmatpush1.msra.mxu0 %v218
    %274 = vmatprep.subr.mxu0 0.0
    %275 = vmatpush1.msra.mxu0 %v217
    %276 = vmatprep.subr.mxu0 0.0
    %277 = vmatpush1.msra.mxu0 %v216
    %278 = vmatprep.subr.mxu0 0.0
    %279 = vmatpush1.msra.mxu0 %v215
    %280 = vmatprep.subr.mxu0 0.0
    %281 = vmatpush1.msra.mxu0 %v214
    %282 = vmatprep.subr.mxu0 0.0
    %283 = vmatpush1.msra.mxu0 %v213
    %284 = vmatprep.subr.mxu0 0.0
    %285 = vmatpush2.msra.mxu0 %v244
    %286 = vmatprep.subr.mxu0 0.0
    %287 = vmatpush2.msra.mxu0 %v243
    %288 = vmatprep.subr.mxu0 0.0
    %289 = vmatpush2.msra.mxu0 %v242
    %290 = vmatprep.subr.mxu0 0.0
    %291 = vmatpush2.msra.mxu0 %v241
    %292 = vmatprep.subr.mxu0 0.0
    %293 = vmatpush2.msra.mxu0 %v240
    %294 = vmatprep.subr.mxu0 0.0
    %295 = vmatpush2.msra.mxu0 %v239
    %296 = vmatprep.subr.mxu0 0.0
    %297 = vmatpush2.msra.mxu0 %v238
    %298 = vmatprep.subr.mxu0 0.0
    %299 = vmatpush2.msra.mxu0 %v237
    %300 = vmatprep.subr.mxu0 0.0
    %301 = vmatpush2.msra.mxu0 %v236
    %302 = vmatprep.subr.mxu0 0.0
    %303 = vmatpush2.msra.mxu0 %v235
    %304 = vmatprep.subr.mxu0 0.0
    %305 = vmatpush2.msra.mxu0 %v234
    %306 = vmatprep.subr.mxu0 0.0
    %307 = vmatpush2.msra.mxu0 %v233
    %308 = vmatprep.subr.mxu0 0.0
    %309 = vmatpush2.msra.mxu0 %v232
    %310 = vmatprep.subr.mxu0 0.0
    %311 = vmatpush2.msra.mxu0 %v231
    %312 = vmatprep.subr.mxu0 0.0
    %313 = vmatpush2.msra.mxu0 %v230
    %314 = vmatprep.subr.mxu0 0.0
    %315 = vmatpush2.msra.mxu0 %v229
    %316 = vmatprep.mubr.f32.mxu0 %v210
    %317 = vmatmul.mubr.f32.gmra.mxu0 %v209
    %v318 = vpop.f32.mrf.mxu0
    %v319 = vadd.f32 %v250, %v318
    %v320 = vpop.f32.mrf.mxu0
    %321 = vmatprep.mubr.f32.mxu0 %v212
    %322 = vmatmul.mubr.f32.gmra.mxu0 %v211
    %v323 = vpop.f32.mrf.mxu0
    %v324 = vadd.f32 %v250, %v323
    %v325 = vpop.f32.mrf.mxu0
    %326 = vdwg.mxu0
    %v327 = vmax.f32 %v319, 0.0
    %v328 = vmax.f32 %v324, 0.0
    %v329 = vld [vmem:[%s5] sm:$0x1]
    %v330 = vld [vmem:[#allocation2] sm:$0x1]
    %332 = vset.pattern.permute.xlu0 0
    %333 = vperm.xlu0 %332, %v330
    %v334 = vpop.permute.xlu0 %333
    %v336 = vlaneseq
    %v337 = vshrl.u32 %v336, 7
    %v338 = vsub.s32 0, %v337
    %v339 = vrot.slane %v334, %v338
    %340 = vmatprep.subr.mxu0 0.0
    %341 = vmatpush1.xpose.msra.mxu0 0.0
    %342 = vmatprep.subr.mxu0 0.0
    %343 = vmatpush1.xpose.msra.mxu0 0.0
    %344 = vmatprep.subr.mxu0 0.0
    %345 = vmatpush1.xpose.msra.mxu0 0.0
    %346 = vmatprep.subr.mxu0 0.0
    %347 = vmatpush1.xpose.msra.mxu0 0.0
    %348 = vmatprep.subr.mxu0 0.0
    %349 = vmatpush1.xpose.msra.mxu0 0.0
    %350 = vmatprep.subr.mxu0 0.0
    %351 = vmatpush1.xpose.msra.mxu0 0.0
    %352 = vmatprep.subr.mxu0 0.0
    %353 = vmatpush1.xpose.msra.mxu0 0.0
    %354 = vmatprep.subr.mxu0 0.0
    %355 = vmatpush1.xpose.msra.mxu0 0.0
    %356 = vmatprep.subr.mxu0 0.0
    %357 = vmatpush1.xpose.msra.mxu0 0.0
    %358 = vmatprep.subr.mxu0 0.0
    %359 = vmatpush1.xpose.msra.mxu0 0.0
    %360 = vmatprep.subr.mxu0 0.0
    %361 = vmatpush1.xpose.msra.mxu0 0.0
    %362 = vmatprep.subr.mxu0 0.0
    %363 = vmatpush1.xpose.msra.mxu0 0.0
    %364 = vmatprep.subr.mxu0 0.0
    %365 = vmatpush1.xpose.msra.mxu0 0.0
    %366 = vmatprep.subr.mxu0 0.0
    %367 = vmatpush1.xpose.msra.mxu0 0.0
    %368 = vmatprep.subr.mxu0 0.0
    %369 = vmatpush1.xpose.msra.mxu0 %v328
    %370 = vmatprep.subr.mxu0 0.0
    %371 = vmatpush1.xpose.msra.mxu0 %v327
    %372 = vmatprep.subr.mxu0 0.0
    %373 = vmatpush2.xpose.msra.mxu0 0.0
    %374 = vmatprep.subr.mxu0 0.0
    %375 = vmatpush2.xpose.msra.mxu0 0.0
    %376 = vmatprep.subr.mxu0 0.0
    %377 = vmatpush2.xpose.msra.mxu0 0.0
    %378 = vmatprep.subr.mxu0 0.0
    %379 = vmatpush2.xpose.msra.mxu0 0.0
    %380 = vmatprep.subr.mxu0 0.0
    %381 = vmatpush2.xpose.msra.mxu0 0.0
    %382 = vmatprep.subr.mxu0 0.0
    %383 = vmatpush2.xpose.msra.mxu0 0.0
    %384 = vmatprep.subr.mxu0 0.0
    %385 = vmatpush2.xpose.msra.mxu0 0.0
    %386 = vmatprep.subr.mxu0 0.0
    %387 = vmatpush2.xpose.msra.mxu0 0.0
    %388 = vmatprep.subr.mxu0 0.0
    %389 = vmatpush2.xpose.msra.mxu0 0.0
    %390 = vmatprep.subr.mxu0 0.0
    %391 = vmatpush2.xpose.msra.mxu0 0.0
    %392 = vmatprep.subr.mxu0 0.0
    %393 = vmatpush2.xpose.msra.mxu0 0.0
    %394 = vmatprep.subr.mxu0 0.0
    %395 = vmatpush2.xpose.msra.mxu0 0.0
    %396 = vmatprep.subr.mxu0 0.0
    %397 = vmatpush2.xpose.msra.mxu0 0.0
    %398 = vmatprep.subr.mxu0 0.0
    %399 = vmatpush2.xpose.msra.mxu0 0.0
    %400 = vmatprep.subr.mxu0 0.0
    %401 = vmatpush2.xpose.msra.mxu0 0.0
    %402 = vmatprep.subr.mxu0 0.0
    %403 = vmatpush2.xpose.msra.mxu0 0.0
    %404 = vmatprep.mubr.f32.mxu0 0.0
    %405 = vmatmul.mubr.f32.gmra.mxu0 %v329
    %v406 = vpop.f32.mrf.mxu0
    %v407 = vadd.f32 %v339, %v406
    %v408 = vpop.f32.mrf.mxu0
    %409 = vdwg.mxu0
    %v410 = vxor.u32 %v407, 2147483648
    %v411 = vmul.f32 %v410, 1.442695
    %v412 = vpow.pop %v411
    %v413 = vadd.f32 %v412, 1.0
    %v414 = vrcp.pop %v413
    %v415 = vmul.f32 1.0, %v414
    %vm416 = vcmask 122880
    %417 = vst.msk [vmem:[%s7] sm:$0x1] %vm416, %v415
    // Predicated region
    $region42: #{continue_predictor_forward.1} parent=1 // pred_check
      _
    $region43: #{continue_predictor_forward.1} parent=1 // pred_check_branch
      %419 = sbr.rel (0) target = $region45
    $region44: #{continue_predictor_forward.1} parent=1 // pred_region
      _
    $region45: #{continue_predictor_forward.1} parent=1 // pred_fallthru
      _
    // Predicated region
    $region46: #{continue_predictor_forward.1} parent=1 // pred_check
      _
    $region47: #{continue_predictor_forward.1} parent=1 // pred_check_branch
      %421 = sbr.rel (0) target = $region49
    $region48: #{continue_predictor_forward.1} parent=1 // pred_region
      _
    $region49: #{continue_predictor_forward.1} parent=1 // pred_fallthru
      _
    %422 = vsyncpa [#allocation4], 1
    %423 = vsyncpa [#allocation6], 1

</llo_original>
